<compile_context>
chip_gen: v7x
topology: tpu7x:2x2x1
jax: 0.10.0
libtpu: 0.0.40
codegen_flags: <defaults>
</compile_context>

<pallas_src>
import functools

import jax
import jax.numpy as jnp
from jax.experimental import pallas as pl
from jax.experimental.pallas import tpu as pltpu


def _ls_ce_kernel(n_rows, ignore_index, tile_n, logits_ref, target_ref, out_ref):
    """One row-tile: emit per-tile partial sums (smooth, nll, valid) in a lane-dense block."""
    i = pl.program_id(0)

    x = logits_ref[...].astype(jnp.float32)                      # (TILE_N, C)
    tile_rows, c = x.shape

    # Numerically stable log-sum-exp per row (no logp tensor materialized).
    m = jnp.max(x, axis=-1, keepdims=True)                       # (TILE_N, 1)
    lse = jnp.log(jnp.sum(jnp.exp(x - m), axis=-1, keepdims=True))
    z = m + lse                                                  # log sum_c exp(x)

    # Mask for padded tail rows (global row index >= n_rows).
    row = jax.lax.broadcasted_iota(jnp.int32, (tile_rows, 1), 0) + i * tile_n
    row_ok = (row < n_rows).astype(jnp.float32)                  # (TILE_N, 1)

    # Label-smoothing term per row: -sum_c logp = C*z - sum_c x
    row_smooth = (c * z - jnp.sum(x, axis=-1, keepdims=True)) * row_ok

    # NLL term per row: -logp[target] = z - x[target]; gather via iota one-hot.
    tgt = target_ref[...]                                        # (TILE_N, 1) int32
    col = jax.lax.broadcasted_iota(jnp.int32, x.shape, 1)        # (TILE_N, C)
    x_t = jnp.sum(jnp.where(col == tgt, x, 0.0), axis=-1, keepdims=True)
    valid = (tgt != ignore_index).astype(jnp.float32) * row_ok   # (TILE_N, 1)
    row_nll = (z - x_t) * valid

    # Per-tile scalar partials, packed into a lane-dense (8, 128) output block:
    #   [0, 0] = sum of smoothing term, [0, 1] = sum of nll term, [0, 2] = valid count.
    s_smooth = jnp.sum(row_smooth)
    s_nll = jnp.sum(row_nll)
    s_valid = jnp.sum(valid)

    lane = jax.lax.broadcasted_iota(jnp.int32, (8, 128), 1)
    sub = jax.lax.broadcasted_iota(jnp.int32, (8, 128), 0)
    first = sub == 0
    blk = jnp.where(first & (lane == 0), s_smooth,
          jnp.where(first & (lane == 1), s_nll,
          jnp.where(first & (lane == 2), s_valid, 0.0)))
    out_ref[...] = blk.reshape(1, 8, 128)


def _pick_tile_n(n, c, itemsize):
    """Pick a row-tile size: multiple of 8, ~4 MiB per input buffer, <= padded N."""
    target_bytes = 4 * 1024 * 1024            # per buffer; x2 for double-buffering
    t = target_bytes // max(c * itemsize, 1)
    t = max(8, min(512, int(t)))
    n_pad8 = ((n + 7) // 8) * 8
    t = min(t, max(8, n_pad8))
    t = max(8, (t // 8) * 8)
    return t


def label_smoothing_cross_entropy(logits, target, *, eps=0.1,
                                  reduction="mean", ignore_index=-100):
    """Pallas implementation of LabelSmoothingCrossEntropy.forward.

    logits: (N, C) float array (f32 or bf16), target: (N,) int array.
    """
    n, c = logits.shape
    itemsize = jnp.dtype(logits.dtype).itemsize
    tile_n = _pick_tile_n(n, c, itemsize)
    num_tiles = (n + tile_n - 1) // tile_n
    n_pad = num_tiles * tile_n

    tgt = target.astype(jnp.int32).reshape(n, 1)
    if n_pad != n:
        # Padded rows: zero logits + ignore_index target; also masked in-kernel by row_ok.
        logits = jnp.pad(logits, ((0, n_pad - n), (0, 0)))
        tgt = jnp.pad(tgt, ((0, n_pad - n), (0, 0)), constant_values=ignore_index)

    kernel = functools.partial(_ls_ce_kernel, n, ignore_index, tile_n)

    cost = pl.CostEstimate(
        flops=6 * n * c,
        transcendentals=n * c + n,
        bytes_accessed=n_pad * c * itemsize + n_pad * 4 + num_tiles * 8 * 128 * 4,
    )

    # Explicit scoped-VMEM budget: our double-buffered tiles target ~8 MiB total, so a
    # 32-48 MiB cap is safe on every generation (v7x physical VMEM is 64 MiB).
    vmem_needed = 2 * (tile_n * c * itemsize + tile_n * 4 + 8 * 128 * 4) + (1 << 20)
    vmem_limit = int(min(48 * 1024 * 1024, max(32 * 1024 * 1024, 2 * vmem_needed)))

    partials = pl.pallas_call(
        kernel,
        out_shape=jax.ShapeDtypeStruct((num_tiles, 8, 128), jnp.float32),
        grid=(num_tiles,),
        in_specs=[
            pl.BlockSpec((tile_n, c), lambda i: (i, 0)),
            pl.BlockSpec((tile_n, 1), lambda i: (i, 0)),
        ],
        out_specs=pl.BlockSpec((1, 8, 128), lambda i: (i, 0, 0)),
        compiler_params=pltpu.CompilerParams(
            dimension_semantics=("parallel",),
            vmem_limit_bytes=vmem_limit,
        ),
        cost_estimate=cost,
    )(logits, tgt)

    smooth_sum = jnp.sum(partials[:, 0, 0])
    nll_sum = jnp.sum(partials[:, 0, 1])
    valid_sum = jnp.sum(partials[:, 0, 2])

    if reduction == "sum":
        smooth_loss = smooth_sum
        nll_loss = nll_sum
    elif reduction == "mean":
        # smoothing term averages over ALL rows (matches the PyTorch module, which does
        # loss.mean() before nll_loss); nll_loss averages over non-ignored rows only.
        smooth_loss = smooth_sum / n
        nll_loss = nll_sum / valid_sum
    else:
        raise NotImplementedError("only 'mean' and 'sum' reductions implemented")

    return smooth_loss * eps / c + (1.0 - eps) * nll_loss


def _reference(logits, target, *, eps=0.1, reduction="mean", ignore_index=-100):
    # Pure-JAX reference mirroring the PyTorch forward.
    n, c = logits.shape
    logp = jax.nn.log_softmax(logits.astype(jnp.float32), axis=-1)
    valid = target != ignore_index
    safe_t = jnp.where(valid, target, 0)
    picked = -jnp.take_along_axis(logp, safe_t[:, None], axis=-1)[:, 0]
    picked = jnp.where(valid, picked, 0.0)
    if reduction == "sum":
        smooth = -jnp.sum(logp)
        nll = jnp.sum(picked)
    else:  # mean
        smooth = jnp.mean(-jnp.sum(logp, axis=-1))
        nll = jnp.sum(picked) / jnp.sum(valid.astype(jnp.float32))
    return smooth * eps / c + (1.0 - eps) * nll


if __name__ == "__main__":
    key = jax.random.PRNGKey(0)

    # Case 1: seq=8, classes=32, one ignored row, reduction='mean'.
    k1, k2, k3, k4 = jax.random.split(key, 4)
    N, C = 8, 32
    logits = jax.random.normal(k1, (N, C), dtype=jnp.float32)
    target = jax.random.randint(k2, (N,), 0, C, dtype=jnp.int32)
    target = target.at[3].set(-100)

    loss = jax.block_until_ready(
        label_smoothing_cross_entropy(logits, target, eps=0.1,
                                      reduction="mean", ignore_index=-100))
    ref = _reference(logits, target, eps=0.1, reduction="mean", ignore_index=-100)
    assert jnp.allclose(loss, ref, rtol=1e-5, atol=1e-5), (loss, ref)

    # Case 2: N not a multiple of the row tile (exercises tail padding/masking) + 'sum'.
    N2, C2 = 20, 32
    logits2 = jax.random.normal(k3, (N2, C2), dtype=jnp.float32)
    target2 = jax.random.randint(k4, (N2,), 0, C2, dtype=jnp.int32)
    target2 = target2.at[0].set(-100)

    for red in ("mean", "sum"):
        loss2 = jax.block_until_ready(
            label_smoothing_cross_entropy(logits2, target2, eps=0.1,
                                          reduction=red, ignore_index=-100))
        ref2 = _reference(logits2, target2, eps=0.1, reduction=red, ignore_index=-100)
        assert jnp.allclose(loss2, ref2, rtol=1e-5, atol=1e-5), (red, loss2, ref2)

    print("KERNEL_OK")
</pallas_src>

<mosaic_0001>
module attributes {stable_mosaic.version = 11 : i64} {
  func.func @_ls_ce_kernel(%arg0: i32, %arg1: memref<8x32xf32, #tpu.memory_space<vmem>>, %arg2: memref<8x1xi32, #tpu.memory_space<vmem>>, %arg3: memref<1x8x128xf32, #tpu.memory_space<vmem>>) attributes {dimension_semantics = [#tpu.dimension_semantics<parallel>], iteration_bounds = array<i64: 1>, scalar_prefetch = 0 : i64, scratch_operands = 0 : i64, tpu.core_type = #tpu.core_type<tc>, window_params = [{transform_indices = @transform_0, window_bounds = array<i64: 8, 32>}, {transform_indices = @transform_1, window_bounds = array<i64: 8, 1>}, {transform_indices = @transform_2, window_bounds = array<i64: 1, 8, 128>}]} {
    %c0 = arith.constant 0 : index
    %c0_0 = arith.constant 0 : index
    %0 = vector.load %arg1[%c0, %c0_0] : memref<8x32xf32, #tpu.memory_space<vmem>>, vector<8x32xf32>
    %cst = arith.constant dense<0xFF800000> : vector<8xf32>
    %1 = vector.multi_reduction <maximumf>, %0, %cst [1] : vector<8x32xf32> to vector<8xf32>
    %2 = vector.shape_cast %1 : vector<8xf32> to vector<8x1xf32>
    %3 = vector.broadcast %2 : vector<8x1xf32> to vector<8x32xf32>
    %4 = arith.subf %0, %3 : vector<8x32xf32>
    %5 = math.exp %4 : vector<8x32xf32>
    %cst_1 = arith.constant dense<0.000000e+00> : vector<8xf32>
    %6 = vector.multi_reduction <add>, %5, %cst_1 [1] : vector<8x32xf32> to vector<8xf32>
    %7 = vector.shape_cast %6 : vector<8xf32> to vector<8x1xf32>
    %8 = math.log %7 : vector<8x1xf32>
    %9 = arith.addf %2, %8 : vector<8x1xf32>
    %10 = tpu.iota {dimensions = array<i32: 0>} : vector<8x1xi32>
    %c8_i32 = arith.constant 8 : i32
    %11 = arith.muli %arg0, %c8_i32 : i32
    %12 = vector.broadcast %11 : i32 to vector<8x1xi32>
    %13 = arith.addi %10, %12 : vector<8x1xi32>
    %c8_i32_2 = arith.constant 8 : i32
    %14 = vector.broadcast %c8_i32_2 : i32 to vector<8x1xi32>
    %15 = arith.cmpi slt, %13, %14 : vector<8x1xi32>
    %16 = arith.extui %15 : vector<8x1xi1> to vector<8x1xi32>
    %17 = arith.sitofp %16 : vector<8x1xi32> to vector<8x1xf32>
    %cst_3 = arith.constant 3.200000e+01 : f32
    %18 = vector.broadcast %cst_3 : f32 to vector<8x1xf32>
    %19 = arith.mulf %18, %9 : vector<8x1xf32>
    %cst_4 = arith.constant dense<0.000000e+00> : vector<8xf32>
    %20 = vector.multi_reduction <add>, %0, %cst_4 [1] : vector<8x32xf32> to vector<8xf32>
    %21 = vector.shape_cast %20 : vector<8xf32> to vector<8x1xf32>
    %22 = arith.subf %19, %21 : vector<8x1xf32>
    %23 = arith.mulf %22, %17 : vector<8x1xf32>
    %c0_5 = arith.constant 0 : index
    %c0_6 = arith.constant 0 : index
    %24 = vector.load %arg2[%c0_5, %c0_6] : memref<8x1xi32, #tpu.memory_space<vmem>>, vector<8x1xi32>
    %25 = tpu.iota {dimensions = array<i32: 1>} : vector<8x32xi32>
    %26 = vector.broadcast %24 : vector<8x1xi32> to vector<8x32xi32>
    %27 = arith.cmpi eq, %25, %26 : vector<8x32xi32>
    %cst_7 = arith.constant 0.000000e+00 : f32
    %28 = vector.broadcast %cst_7 : f32 to vector<8x32xf32>
    %29 = arith.select %27, %0, %28 : vector<8x32xi1>, vector<8x32xf32>
    %cst_8 = arith.constant dense<0.000000e+00> : vector<8xf32>
    %30 = vector.multi_reduction <add>, %29, %cst_8 [1] : vector<8x32xf32> to vector<8xf32>
    %31 = vector.shape_cast %30 : vector<8xf32> to vector<8x1xf32>
    %c-100_i32 = arith.constant -100 : i32
    %32 = vector.broadcast %c-100_i32 : i32 to vector<8x1xi32>
    %33 = arith.cmpi ne, %24, %32 : vector<8x1xi32>
    %34 = arith.extui %33 : vector<8x1xi1> to vector<8x1xi32>
    %35 = arith.sitofp %34 : vector<8x1xi32> to vector<8x1xf32>
    %36 = arith.mulf %35, %17 : vector<8x1xf32>
    %37 = arith.subf %9, %31 : vector<8x1xf32>
    %38 = arith.mulf %37, %36 : vector<8x1xf32>
    %39 = vector.shape_cast %23 : vector<8x1xf32> to vector<1x8x1xf32>
    %cst_9 = arith.constant dense<0.000000e+00> : vector<1xf32>
    %40 = vector.multi_reduction <add>, %39, %cst_9 [1, 2] : vector<1x8x1xf32> to vector<1xf32>
    %41 = vector.shape_cast %40 : vector<1xf32> to vector<1x1x1xf32>
    %42 = vector.extract %41[0, 0, 0] : f32 from vector<1x1x1xf32>
    %43 = vector.shape_cast %38 : vector<8x1xf32> to vector<1x8x1xf32>
    %cst_10 = arith.constant dense<0.000000e+00> : vector<1xf32>
    %44 = vector.multi_reduction <add>, %43, %cst_10 [1, 2] : vector<1x8x1xf32> to vector<1xf32>
    %45 = vector.shape_cast %44 : vector<1xf32> to vector<1x1x1xf32>
    %46 = vector.extract %45[0, 0, 0] : f32 from vector<1x1x1xf32>
    %47 = vector.shape_cast %36 : vector<8x1xf32> to vector<1x8x1xf32>
    %cst_11 = arith.constant dense<0.000000e+00> : vector<1xf32>
    %48 = vector.multi_reduction <add>, %47, %cst_11 [1, 2] : vector<1x8x1xf32> to vector<1xf32>
    %49 = vector.shape_cast %48 : vector<1xf32> to vector<1x1x1xf32>
    %50 = vector.extract %49[0, 0, 0] : f32 from vector<1x1x1xf32>
    %51 = tpu.iota {dimensions = array<i32: 1>} : vector<8x128xi32>
    %52 = tpu.iota {dimensions = array<i32: 0>} : vector<8x128xi32>
    %c0_i32 = arith.constant 0 : i32
    %53 = vector.broadcast %c0_i32 : i32 to vector<8x128xi32>
    %54 = arith.cmpi eq, %52, %53 : vector<8x128xi32>
    %c0_i32_12 = arith.constant 0 : i32
    %55 = vector.broadcast %c0_i32_12 : i32 to vector<8x128xi32>
    %56 = arith.cmpi eq, %51, %55 : vector<8x128xi32>
    %57 = arith.andi %54, %56 : vector<8x128xi1>
    %c1_i32 = arith.constant 1 : i32
    %58 = vector.broadcast %c1_i32 : i32 to vector<8x128xi32>
    %59 = arith.cmpi eq, %51, %58 : vector<8x128xi32>
    %60 = arith.andi %54, %59 : vector<8x128xi1>
    %c2_i32 = arith.constant 2 : i32
    %61 = vector.broadcast %c2_i32 : i32 to vector<8x128xi32>
    %62 = arith.cmpi eq, %51, %61 : vector<8x128xi32>
    %63 = arith.andi %54, %62 : vector<8x128xi1>
    %cst_13 = arith.constant 0.000000e+00 : f32
    %64 = vector.broadcast %50 : f32 to vector<8x128xf32>
    %65 = vector.broadcast %cst_13 : f32 to vector<8x128xf32>
    %66 = arith.select %63, %64, %65 : vector<8x128xi1>, vector<8x128xf32>
    %67 = vector.broadcast %46 : f32 to vector<8x128xf32>
    %68 = arith.select %60, %67, %66 : vector<8x128xi1>, vector<8x128xf32>
    %69 = vector.broadcast %42 : f32 to vector<8x128xf32>
    %70 = arith.select %57, %69, %68 : vector<8x128xi1>, vector<8x128xf32>
    %71 = vector.shape_cast %70 : vector<8x128xf32> to vector<1x8x128xf32>
    %c0_14 = arith.constant 0 : index
    %c0_15 = arith.constant 0 : index
    %c0_16 = arith.constant 0 : index
    %72 = vector.load %arg3[%c0_14, %c0_15, %c0_16] : memref<1x8x128xf32, #tpu.memory_space<vmem>>, vector<1x8x128xf32>
    tpu.vector_store %arg3[%c0_14, %c0_15, %c0_16], %71 {strides = array<i32>} : memref<1x8x128xf32, #tpu.memory_space<vmem>>, vector<1x8x128xf32>,
    return
  }
  func.func @transform_0(%arg0: i32) -> (i32, i32) {
    %c0_i32 = arith.constant 0 : i32
    %c0_i32_0 = arith.constant 0 : i32
    return %arg0, %c0_i32 : i32, i32
  }
  func.func @transform_1(%arg0: i32) -> (i32, i32) {
    %c0_i32 = arith.constant 0 : i32
    %c0_i32_0 = arith.constant 0 : i32
    return %arg0, %c0_i32 : i32, i32
  }
  func.func @transform_2(%arg0: i32) -> (i32, i32, i32) {
    %c0_i32 = arith.constant 0 : i32
    %c0_i32_0 = arith.constant 0 : i32
    %c0_i32_1 = arith.constant 0 : i32
    return %arg0, %c0_i32, %c0_i32_0 : i32, i32, i32
  }
}

</mosaic_0001>

<llo_original>
// kernel: tpu_custom_call.1
$region0: #{tpu_custom_call.1}
  #allocation0 [shape = 'u32[]', space=smem, size = 0x4, offset = 0x4, fixed_abs, tag = 'smem constant byte address 0x4 - core index']
  #allocation1 [shape = 'u32[144,128]{1,0:T(1,128)}', space=vmem, size = 0x12000, scoped, tag = 'internal scratch']
  %s0 = inlined_call_operand.vmem [shape: f32[8,32], index: 0, kind: input, shape index: {}]
  %s1 = inlined_call_operand.vmem [shape: s32[8,1], index: 1, kind: input, shape index: {}]
  %s2 = inlined_call_operand.hbm [shape: f32[1,8,128], index: 2, kind: output, shape index: {}]
  %s3 = sld [smem:[#allocation0]]
  $region18: #{tpu_custom_call.1} parent=0
    _
  %s5 = ssub.s32 1, %s3
  %s6 = scalar_select 0, %s5, %s3
  $region1: #{tpu_custom_call.1} parent=0
    #allocation2 [shape = 'u8[4096]{0}', space=vmem, size = 0x1000, scoped, tag = 'output window, operand 0, single buffered']
    #allocation3 [shape = 's32[1]{0}', space=sflag, size = 0x4, scoped, tag = 'scoped memory for tpu_custom_call.1']
    %7 = vsyncpa [#allocation3], 0
    // Predicated region
    $region2: #{tpu_custom_call.1} parent=1 // pred_check
      _
    $region3: #{tpu_custom_call.1} parent=1 // pred_check_branch
      %9 = sbr.rel (0) target = $region5
    $region4: #{tpu_custom_call.1} parent=1 // pred_region
      _
    $region5: #{tpu_custom_call.1} parent=1 // pred_fallthru
      _
    // Predicated region
    $region6: #{tpu_custom_call.1} parent=1 // pred_check
      _
    $region7: #{tpu_custom_call.1} parent=1 // pred_check_branch
      %11 = sbr.rel (0) target = $region9
    $region8: #{tpu_custom_call.1} parent=1 // pred_region
      _
    $region9: #{tpu_custom_call.1} parent=1 // pred_fallthru
      _
    %v12 = vld [vmem:[%s0] sm:$0xff]
    %vm13 = vcmask 261120
    %v14 = vsel %vm13, %v12, -inf
    %15 = vmax.xlane.f32.xlu0 %v14
    %v16 = vpop.xlane.xlu0 %15
    %v17 = vsub.f32 %v12, %v16
    %v18 = vmul.f32 %v17, 1.442695
    %v19 = vpow.pop %v18
    %v20 = vsel %vm13, %v19, 0.0
    %21 = vadd.xlane.f32.xlu0 %v20
    %v22 = vpop.xlane.xlu0 %21
    %v23 = vlog2.pop %v22
    %v24 = vmul.f32 %v23, 0.6931472
    %v25 = vadd.f32 %v16, %v24
    %v26 = vlaneseq
    %v27 = vshrl.u32 %v26, 7
    %s28 = smul.u32 0, 8
    %v29 = vstv %s28
    %v30 = vadd.s32 %v27, %v29
    %vm31 = vcmp.lt.s32.totalorder %v30, 8
    %v32 = vsel %vm31, 1, 0
    %v33 = vcvt.s32.f32 %v32
    %v34 = vmul.f32 %v25, 32.0
    %v35 = vsel %vm13, %v12, 0.0
    %36 = vadd.xlane.f32.xlu0 %v35
    %v37 = vpop.xlane.xlu0 %36
    %v38 = vsub.f32 %v34, %v37
    %v39 = vmul.f32 %v38, %v33
    %v40 = vld [vmem:[%s1] sm:$0xff]
    %v41 = vlaneseq
    %v42 = vand.u32 %v41, 127
    %43 = vset.pattern.permute.xlu0 0
    %44 = vperm.xlu0 %43, %v40
    %v45 = vpop.permute.xlu0 %44
    %vm46 = vcmp.eq.s32.totalorder %v42, %v45
    %v47 = vsel %vm46, %v12, 0.0
    %v48 = vsel %vm13, %v47, 0.0
    %49 = vadd.xlane.f32.xlu0 %v48
    %v50 = vpop.xlane.xlu0 %49
    %vm51 = vcmp.ne.s32.totalorder %v40, 4294967196
    %v52 = vsel %vm51, 1, 0
    %v53 = vcvt.s32.f32 %v52
    %v54 = vmul.f32 %v53, %v33
    %v55 = vsub.f32 %v25, %v50
    %v56 = vmul.f32 %v55, %v54
    %vm57 = vcmask 7168
    %v58 = vsel %vm57, %v39, 0.0
    %59 = vadd.xlane.f32.xlu0 %v58
    %v60 = vpop.xlane.xlu0 %59
    %v61 = vrot.slane %v60, 4
    %v62 = vadd.f32 %v60, %v61
    %v63 = vrot.slane %v62, 2
    %v64 = vadd.f32 %v62, %v63
    %v65 = vrot.slane %v64, 1
    %v66 = vadd.f32 %v64, %v65
    %s67 = vtos %v66
    %v68 = vsel %vm57, %v56, 0.0
    %69 = vadd.xlane.f32.xlu0 %v68
    %v70 = vpop.xlane.xlu0 %69
    %v71 = vrot.slane %v70, 4
    %v72 = vadd.f32 %v70, %v71
    %v73 = vrot.slane %v72, 2
    %v74 = vadd.f32 %v72, %v73
    %v75 = vrot.slane %v74, 1
    %v76 = vadd.f32 %v74, %v75
    %s77 = vtos %v76
    %v78 = vsel %vm57, %v54, 0.0
    %79 = vadd.xlane.f32.xlu0 %v78
    %v80 = vpop.xlane.xlu0 %79
    %v81 = vrot.slane %v80, 4
    %v82 = vadd.f32 %v80, %v81
    %v83 = vrot.slane %v82, 2
    %v84 = vadd.f32 %v82, %v83
    %v85 = vrot.slane %v84, 1
    %v86 = vadd.f32 %v84, %v85
    %s87 = vtos %v86
    %vm88 = vcmp.eq.s32.totalorder %v27, 0
    %vm89 = vcmp.eq.s32.totalorder %v42, 0
    %vm90 = vmand %vm88, %vm89
    %vm91 = vcmp.eq.s32.totalorder %v42, 1
    %vm92 = vmand %vm88, %vm91
    %vm93 = vcmp.eq.s32.totalorder %v42, 2
    %vm94 = vmand %vm88, %vm93
    %v95 = vstv %s87
    %v96 = vsel %vm94, %v95, 0.0
    %v97 = vstv %s77
    %v98 = vsel %vm92, %v97, %v96
    %v99 = vstv %s67
    %v100 = vsel %vm90, %v99, %v98
    %101 = vst [vmem:[#allocation2] sm:$0xff] %v100
    // Predicated region
    $region10: #{tpu_custom_call.1} parent=1 // pred_check
      _
    $region11: #{tpu_custom_call.1} parent=1 // pred_check_branch
      %103 = sbr.rel (0) target = $region13
    $region12: #{tpu_custom_call.1} parent=1 // pred_region
      %s105 = ssub.s32 128, 128
      %106 = vsyncadd [#allocation3], %s105
      %s108 = sshll.u32 [#allocation2], 4
      %s109 = int_to_ptr.vmem [resolvable:$true] %s108
      %111 = dma.vmem_to_hbm [thread:$0]  %s109, 128, %s2, [#allocation3]
    $region13: #{tpu_custom_call.1} parent=1 // pred_fallthru
      _
    // Predicated region
    $region14: #{tpu_custom_call.1} parent=1 // pred_check
      _
    $region15: #{tpu_custom_call.1} parent=1 // pred_check_branch
      %113 = sbr.rel (0) target = $region17
    $region16: #{tpu_custom_call.1} parent=1 // pred_region
      %114 = dma.done [#allocation3], 128
    $region17: #{tpu_custom_call.1} parent=1 // pred_fallthru
      _
    %115 = vsyncpa [#allocation3], 1

</llo_original>
